<compile_context>
chip_gen: v6e
topology: v6e:2x2x1
jax: 0.10.0
libtpu: 0.0.40
codegen_flags: <defaults>
</compile_context>

<pallas_src>
import jax
import jax.numpy as jnp
from jax.experimental import pallas as pl
from jax.experimental.pallas import tpu as pltpu


def mlp_kernel(x_ref, w1_ref, b1_ref, w2t_ref, b2_ref, o_ref):
    # dense1: x @ W1 on the MXU with f32 accumulation; bias + ReLU on the VPU in f32.
    h = jnp.dot(x_ref[...], w1_ref[...], preferred_element_type=jnp.float32)
    h = jnp.maximum(h + b1_ref[...], 0.0)                       # (tb, H) f32

    # dense4 (out_features == 1): contract H of both operands (like q @ k^T), so the
    # batch dim lands on the LANE axis -> (1, tb) lane-dense result row (no (tb, 1)
    # masked-store column, no explicit transpose of the large h operand).
    # TODO(synk): if D/H are scaled up, audit this dot for an inserted relayout of h
    # and add a trailing "arbitrary" K-reduction grid axis with a f32 VMEM accumulator
    # instead of keeping the full (D, H) W1 resident.
    z = jax.lax.dot_general(
        w2t_ref[...], h,
        dimension_numbers=(((1,), (1,)), ((), ())),
        preferred_element_type=jnp.float32)                     # (1, tb)

    z = jax.nn.sigmoid(z + b2_ref[0])                           # scalar bias from SMEM
    # Replicate across 8 sublanes so the (1, 8, tb) output block is written with full,
    # unmasked vector stores (output bytes stay ~1/16 of input bytes).
    o_ref[...] = jnp.broadcast_to(z[:, None, :], o_ref.shape).astype(o_ref.dtype)


_TB_TARGET = 16384          # rows per x tile (review: 4096-32768; DMA >= ~2 MiB/step)


def _round_up(v, m):
    return -(-v // m) * m


def _vmem_budget_and_limit():
    """Generation-aware VMEM budget (bytes) and compiler vmem limit to request."""
    try:
        cap = int(pltpu.get_tpu_info().vmem_capacity_bytes)
    except Exception:
        cap = 64 * 1024 * 1024          # conservative fallback: v7x-sized VMEM
    cap = max(cap, 32 * 1024 * 1024)
    budget = int(cap * 0.55)            # headroom for compiler temporaries / spills
    limit = min(cap - (8 << 20), budget + (16 << 20))
    return budget, limit


def _footprint_bytes(tb, D, H, x_itemsize):
    """Lane/sublane-padding-aware VMEM estimate for one grid step."""
    d_lanes = _round_up(D, 128)
    h_lanes = _round_up(H, 128)
    x_bufs = 3 * tb * d_lanes * x_itemsize                    # Buffered(3) x stream
    h_tmp = 2 * tb * h_lanes * 4                              # f32 hidden (+ slack)
    w_bufs = 2 * (_round_up(D, 8) * h_lanes * x_itemsize + 2 * 8 * h_lanes * 4)
    o_bufs = 2 * 8 * tb * 4                                   # (1, 8, tb) f32 out blocks
    return x_bufs + h_tmp + w_bufs + o_bufs


def _choose_tb(B, D, H, x_itemsize, budget):
    """Largest lane/sublane-friendly batch tile that fits the VMEM budget."""
    tb = min(_TB_TARGET, B)
    # Very large batches: keep >= 2 grid steps so both TensorCores get work on 2-TC
    # parts (v7x); costs one extra ~0.35us grid step on single-TC generations.
    if B >= 8192:
        tb = min(tb, _round_up(-(-B // 2), 128))
    if tb < B:
        tb = max(128, (tb // 128) * 128)
    while tb > 128 and _footprint_bytes(tb, D, H, x_itemsize) > budget:
        tb = max(128, (tb // 2 // 128) * 128)
    return tb


def _x_spec(tb, D, multi_buffer):
    idx = lambda i: (i, 0)
    if multi_buffer:
        try:
            # Keep >= 2 x DMAs outstanding (per-step compute is ~0 at D=H=32).
            return pl.BlockSpec((tb, D), idx, pipeline_mode=pl.Buffered(3))
        except Exception:
            pass                        # older jax: fall back to default double-buffer
    return pl.BlockSpec((tb, D), idx)


def trucles_linear_forward(x, w1, b1, w2, b2, *, tb=None):
    """Forward pass of trucles_linear.

    x : (B, D)   input (streamed in its incoming dtype; f32 by default)
    w1: (D, H)   dense1 weight stored (in, out)
    b1: (H,)
    w2: (H, 1)   dense4 weight stored (in, out)
    b2: (1,)
    returns (B, 1) float32
    """
    B, D = x.shape
    H = w1.shape[1]
    x_dtype = x.dtype
    budget, vmem_limit = _vmem_budget_and_limit()

    if tb is None:
        tb = _choose_tb(B, D, H, jnp.dtype(x_dtype).itemsize, budget)
    if tb >= B:
        tb, G = B, 1                    # single tile: block == full array, no padding
    else:
        tb = max(128, (tb // 128) * 128)
        G = pl.cdiv(B, tb)
    Bp = G * tb

    x_in = x
    if Bp != B:
        # TODO(synk): replace with an overlapping element-offset last tile (row writes
        # are idempotent) so ragged batches don't pay a full HBM pad pass.
        x_in = jnp.pad(x, ((0, Bp - B), (0, 0)))

    w1_in = w1.astype(x_dtype)                      # tiny; lets MXU consume bf16 inputs
    b1_row = b1.reshape(1, H).astype(jnp.float32)
    w2t = w2.reshape(H, 1).T.astype(jnp.float32)    # (1, H), tiny: keep f32
    b2_s = b2.reshape(1).astype(jnp.float32)        # scalar bias, lives in SMEM

    out = pl.pallas_call(
        mlp_kernel,
        out_shape=jax.ShapeDtypeStruct((G, 8, tb), jnp.float32),
        grid_spec=pltpu.PrefetchScalarGridSpec(
            num_scalar_prefetch=0,
            grid=(G,),
            in_specs=[
                _x_spec(tb, D, multi_buffer=(G > 1)),               # streamed x tiles
                pl.BlockSpec((D, H), lambda i: (0, 0)),              # W1 (resident)
                pl.BlockSpec((1, H), lambda i: (0, 0)),              # b1 (resident)
                pl.BlockSpec((1, H), lambda i: (0, 0)),              # w2^T (resident)
                pl.BlockSpec(memory_space=pltpu.MemorySpace.SMEM),   # b2 scalar
            ],
            out_specs=pl.BlockSpec((1, 8, tb), lambda i: (i, 0, 0)),  # lane-dense row
        ),
        compiler_params=pltpu.CompilerParams(
            dimension_semantics=("parallel",),       # batch axis shards across TCs
            vmem_limit_bytes=vmem_limit,             # generation-aware limit
        ),
    )(x_in, w1_in, b1_row, w2t, b2_s)

    # Sublane 0 of each (8, tb) output block holds the result row; drop pad rows.
    return out[:, 0, :].reshape(Bp)[:B].reshape(B, 1)


def init_params(key, input_dim, hidden_dim):
    """Deterministic PyTorch-style (Kaiming-uniform-ish) init, pre-transposed."""
    k1, k2, k3, k4 = jax.random.split(key, 4)
    bound1 = 1.0 / jnp.sqrt(input_dim)
    bound2 = 1.0 / jnp.sqrt(hidden_dim)
    w1 = jax.random.uniform(k1, (input_dim, hidden_dim), jnp.float32, -bound1, bound1)
    b1 = jax.random.uniform(k2, (hidden_dim,), jnp.float32, -bound1, bound1)
    w2 = jax.random.uniform(k3, (hidden_dim, 1), jnp.float32, -bound2, bound2)
    b2 = jax.random.uniform(k4, (1,), jnp.float32, -bound2, bound2)
    return w1, b1, w2, b2


def _reference(x, w1, b1, w2, b2):
    return jax.nn.sigmoid(jnp.maximum(x @ w1 + b1, 0.0) @ w2 + b2)


if __name__ == "__main__":
    key = jax.random.PRNGKey(0)
    kx, kp, kx2, kx3 = jax.random.split(key, 4)

    # Small shapes matching the module.
    batch, input_dim, hidden_dim = 8, 32, 32
    x = jax.random.normal(kx, (batch, input_dim), jnp.float32)
    w1, b1, w2, b2 = init_params(kp, input_dim, hidden_dim)

    # Tolerance note: MXU matmul paths (kernel vs. XLA reference) may differ at
    # bf16-pass precision on the pre-sigmoid logit, so compare at 2e-3.
    out = jax.block_until_ready(trucles_linear_forward(x, w1, b1, w2, b2))
    ref = _reference(x, w1, b1, w2, b2)
    assert out.shape == (batch, 1)
    assert jnp.allclose(out, ref, atol=2e-3, rtol=2e-3)

    # Larger, non-multiple batch: single big tile (tb == B), no padding pass.
    big_b = 1030
    xb = jax.random.normal(kx2, (big_b, input_dim), jnp.float32)
    out_big = jax.block_until_ready(trucles_linear_forward(xb, w1, b1, w2, b2))
    assert out_big.shape == (big_b, 1)
    assert jnp.allclose(out_big, _reference(xb, w1, b1, w2, b2), atol=2e-3, rtol=2e-3)

    # Multi-tile grid (G = 4) with no padding: exercises streaming + parallel batch axis.
    xb2 = jax.random.normal(kx3, (4096, input_dim), jnp.float32)
    out_mt = jax.block_until_ready(
        trucles_linear_forward(xb2, w1, b1, w2, b2, tb=1024))
    assert out_mt.shape == (4096, 1)
    assert jnp.allclose(out_mt, _reference(xb2, w1, b1, w2, b2), atol=2e-3, rtol=2e-3)

    # Ragged multi-tile fallback path (pads x up to the tile boundary).
    out_rag = jax.block_until_ready(
        trucles_linear_forward(xb, w1, b1, w2, b2, tb=256))
    assert out_rag.shape == (big_b, 1)
    assert jnp.allclose(out_rag, _reference(xb, w1, b1, w2, b2), atol=2e-3, rtol=2e-3)

    print("KERNEL_OK")
</pallas_src>

<mosaic_0001>
module attributes {stable_mosaic.version = 11 : i64} {
  func.func @mlp_kernel(%arg0: i32, %arg1: memref<8x32xf32, #tpu.memory_space<vmem>>, %arg2: memref<32x32xf32, #tpu.memory_space<vmem>>, %arg3: memref<1x32xf32, #tpu.memory_space<vmem>>, %arg4: memref<1x32xf32, #tpu.memory_space<vmem>>, %arg5: memref<1xf32, #tpu.memory_space<smem>>, %arg6: memref<1x8x8xf32, #tpu.memory_space<vmem>>) attributes {dimension_semantics = [#tpu.dimension_semantics<parallel>], iteration_bounds = array<i64: 1>, scalar_prefetch = 0 : i64, scratch_operands = 0 : i64, tpu.core_type = #tpu.core_type<tc>, window_params = [{transform_indices = @transform_0, window_bounds = array<i64: 8, 32>}, {pipeline_mode = #tpu.pipeline_mode<synchronous>, transform_indices = @transform_1, window_bounds = array<i64: 32, 32>}, {pipeline_mode = #tpu.pipeline_mode<synchronous>, transform_indices = @transform_2, window_bounds = array<i64: 1, 32>}, {pipeline_mode = #tpu.pipeline_mode<synchronous>, transform_indices = @transform_3, window_bounds = array<i64: 1, 32>}, {transform_indices = @transform_4, window_bounds = array<i64: 1>}, {transform_indices = @transform_5, window_bounds = array<i64: 1, 8, 8>}]} {
    %c0 = arith.constant 0 : index
    %c0_0 = arith.constant 0 : index
    %0 = vector.load %arg1[%c0, %c0_0] : memref<8x32xf32, #tpu.memory_space<vmem>>, vector<8x32xf32>
    %c0_1 = arith.constant 0 : index
    %c0_2 = arith.constant 0 : index
    %1 = vector.load %arg2[%c0_1, %c0_2] : memref<32x32xf32, #tpu.memory_space<vmem>>, vector<32x32xf32>
    %cst = arith.constant dense<0.000000e+00> : vector<8x32xf32>
    %2 = tpu.matmul %0, %1, %cst {dimension_numbers = #tpu.dot_dimension_numbers<[1], [0], [0], [1], [0, 0, 1, 1], [], []>} : vector<8x32xf32>, vector<32x32xf32>, vector<8x32xf32> -> vector<8x32xf32>
    %c0_3 = arith.constant 0 : index
    %c0_4 = arith.constant 0 : index
    %3 = vector.load %arg3[%c0_3, %c0_4] : memref<1x32xf32, #tpu.memory_space<vmem>>, vector<1x32xf32>
    %4 = vector.broadcast %3 : vector<1x32xf32> to vector<8x32xf32>
    %5 = arith.addf %2, %4 : vector<8x32xf32>
    %cst_5 = arith.constant 0.000000e+00 : f32
    %6 = vector.broadcast %cst_5 : f32 to vector<8x32xf32>
    %7 = arith.maximumf %5, %6 : vector<8x32xf32>
    %c0_6 = arith.constant 0 : index
    %c0_7 = arith.constant 0 : index
    %8 = vector.load %arg4[%c0_6, %c0_7] : memref<1x32xf32, #tpu.memory_space<vmem>>, vector<1x32xf32>
    %cst_8 = arith.constant dense<0.000000e+00> : vector<1x8xf32>
    %9 = tpu.matmul %8, %7, %cst_8 {dimension_numbers = #tpu.dot_dimension_numbers<[1], [1], [0], [0], [0, 0, 1, 0], [], []>} : vector<1x32xf32>, vector<8x32xf32>, vector<1x8xf32> -> vector<1x8xf32>
    %c0_9 = arith.constant 0 : index
    %10 = memref.load %arg5[%c0_9] : memref<1xf32, #tpu.memory_space<smem>>
    %11 = vector.broadcast %10 : f32 to vector<1x8xf32>
    %12 = arith.addf %9, %11 : vector<1x8xf32>
    %13 = arith.negf %12 : vector<1x8xf32>
    %14 = math.exp %13 : vector<1x8xf32>
    %cst_10 = arith.constant 1.000000e+00 : f32
    %15 = vector.broadcast %cst_10 : f32 to vector<1x8xf32>
    %16 = arith.addf %15, %14 : vector<1x8xf32>
    %17 = arith.divf %15, %16 : vector<1x8xf32>
    %18 = vector.shape_cast %17 : vector<1x8xf32> to vector<1x1x8xf32>
    %19 = vector.shape_cast %18 : vector<1x1x8xf32> to vector<1x1x8xf32>
    %20 = vector.broadcast %19 : vector<1x1x8xf32> to vector<1x8x8xf32>
    %c0_11 = arith.constant 0 : index
    %c0_12 = arith.constant 0 : index
    %c0_13 = arith.constant 0 : index
    %21 = vector.load %arg6[%c0_11, %c0_12, %c0_13] : memref<1x8x8xf32, #tpu.memory_space<vmem>>, vector<1x8x8xf32>
    tpu.vector_store %arg6[%c0_11, %c0_12, %c0_13], %20 {strides = array<i32>} : memref<1x8x8xf32, #tpu.memory_space<vmem>>, vector<1x8x8xf32>,
    return
  }
  func.func @transform_0(%arg0: i32) -> (i32, i32) {
    %c0_i32 = arith.constant 0 : i32
    %c0_i32_0 = arith.constant 0 : i32
    return %arg0, %c0_i32 : i32, i32
  }
  func.func @transform_1(%arg0: i32) -> (i32, i32) {
    %c0_i32 = arith.constant 0 : i32
    %c0_i32_0 = arith.constant 0 : i32
    %c0_i32_1 = arith.constant 0 : i32
    return %c0_i32, %c0_i32_0 : i32, i32
  }
  func.func @transform_2(%arg0: i32) -> (i32, i32) {
    %c0_i32 = arith.constant 0 : i32
    %c0_i32_0 = arith.constant 0 : i32
    %c0_i32_1 = arith.constant 0 : i32
    return %c0_i32, %c0_i32_0 : i32, i32
  }
  func.func @transform_3(%arg0: i32) -> (i32, i32) {
    %c0_i32 = arith.constant 0 : i32
    %c0_i32_0 = arith.constant 0 : i32
    %c0_i32_1 = arith.constant 0 : i32
    return %c0_i32, %c0_i32_0 : i32, i32
  }
  func.func @transform_4(%arg0: i32) -> i32 {
    %c0_i32 = arith.constant 0 : i32
    %c0_i32_0 = arith.constant 0 : i32
    return %c0_i32 : i32
  }
  func.func @transform_5(%arg0: i32) -> (i32, i32, i32) {
    %c0_i32 = arith.constant 0 : i32
    %c0_i32_0 = arith.constant 0 : i32
    %c0_i32_1 = arith.constant 0 : i32
    return %arg0, %c0_i32, %c0_i32_0 : i32, i32, i32
  }
}

</mosaic_0001>

<llo_original>
// kernel: tpu_custom_call.1
$region0: #{tpu_custom_call.1}
  #allocation0 [shape = 'u32[]', space=smem, size = 0x4, offset = 0x4, fixed_abs, tag = 'smem constant byte address 0x4 - core index']
  #allocation1 [shape = 'u32[144,128]{1,0:T(1,128)}', space=vmem, size = 0x12000, scoped, tag = 'internal scratch']
  #allocation2 [shape = 'f32[1]{0:T(128)S(6)}', space=smem, size = 0x200, scoped, tag = 'scoped memory for tpu_custom_call.1']
  %s0 = inlined_call_operand.hbm [shape: f32[8,32], index: 0, kind: input, shape index: {}]
  %s1 = inlined_call_operand.hbm [shape: f32[32,32], index: 1, kind: input, shape index: {}]
  %s2 = inlined_call_operand.vmem [shape: f32[1,32], index: 2, kind: input, shape index: {}]
  %s3 = inlined_call_operand.vmem [shape: f32[1,32], index: 3, kind: input, shape index: {}]
  %s4 = inlined_call_operand.<no memory space> [shape: f32[1], index: 4, kind: input, shape index: {}]
  %s5 = inlined_call_operand.hbm [shape: f32[1,8,8], index: 5, kind: output, shape index: {}]
  %s6 = sld [smem:[#allocation0]]
  $region38: #{tpu_custom_call.1} parent=0
    _
  %s8 = ssub.s32 1, %s6
  %s9 = scalar_select 0, %s8, %s6
  %10 = sst [smem:[#allocation2]] %s4
  $region1: #{tpu_custom_call.1} parent=0
    #allocation3 [shape = 'u8[4096]{0}', space=vmem, size = 0x1000, scoped, tag = 'input window, operand 0, single buffered']
    #allocation4 [shape = 's32[1]{0}', space=sflag, size = 0x4, scoped, tag = 'scoped memory for tpu_custom_call.1']
    #allocation5 [shape = 's32[1]{0}', space=sflag, size = 0x4, scoped, tag = 'scoped memory for tpu_custom_call.1']
    #allocation6 [shape = 'u8[16384]{0}', space=vmem, size = 0x4000, scoped, tag = 'input window, operand 1, single buffered']
    #allocation7 [shape = 's32[1]{0}', space=sflag, size = 0x4, scoped, tag = 'scoped memory for tpu_custom_call.1']
    #allocation8 [shape = 'u8[4096]{0}', space=vmem, size = 0x1000, scoped, tag = 'output window, operand 0, single buffered']
    %11 = vsyncpa [#allocation4], 0
    %12 = vsyncpa [#allocation7], 0
    %13 = vsyncpa [#allocation5], 0
    // Predicated region
    $region2: #{tpu_custom_call.1} parent=1 // pred_check
      _
    $region3: #{tpu_custom_call.1} parent=1 // pred_check_branch
      %15 = sbr.rel (0) target = $region5
    $region4: #{tpu_custom_call.1} parent=1 // pred_region
      %s17 = ssub.s32 128, 128
      %18 = vsyncadd [#allocation4], %s17
      %s20 = sshll.u32 [#allocation3], 4
      %s21 = int_to_ptr.vmem [resolvable:$true] %s20
      %23 = dma.hbm_to_vmem [thread:$0]  %s0, 128, %s21, [#allocation4]
    $region5: #{tpu_custom_call.1} parent=1 // pred_fallthru
      _
    // Predicated region
    $region6: #{tpu_custom_call.1} parent=1 // pred_check
      _
    $region7: #{tpu_custom_call.1} parent=1 // pred_check_branch
      %25 = sbr.rel (0) target = $region9
    $region8: #{tpu_custom_call.1} parent=1 // pred_region
      %s27 = ssub.s32 512, 512
      %28 = vsyncadd [#allocation7], %s27
      %s29 = sshll.u32 [#allocation6], 4
      %s30 = int_to_ptr.vmem [resolvable:$true] %s29
      %35 = dma.hbm_to_vmem [thread:$0]  %s1, 512, %s30, [#allocation7], 128, 128, 8
    $region9: #{tpu_custom_call.1} parent=1 // pred_fallthru
      _
    // Predicated region
    $region10: #{tpu_custom_call.1} parent=1 // pred_check
      _
    $region11: #{tpu_custom_call.1} parent=1 // pred_check_branch
      %37 = sbr.rel (0) target = $region13
    $region12: #{tpu_custom_call.1} parent=1 // pred_region
      _
    $region13: #{tpu_custom_call.1} parent=1 // pred_fallthru
      _
    // Predicated region
    $region14: #{tpu_custom_call.1} parent=1 // pred_check
      _
    $region15: #{tpu_custom_call.1} parent=1 // pred_check_branch
      %39 = sbr.rel (0) target = $region17
    $region16: #{tpu_custom_call.1} parent=1 // pred_region
      _
    $region17: #{tpu_custom_call.1} parent=1 // pred_fallthru
      _
    // Predicated region
    $region18: #{tpu_custom_call.1} parent=1 // pred_check
      _
    $region19: #{tpu_custom_call.1} parent=1 // pred_check_branch
      %41 = sbr.rel (0) target = $region21
    $region20: #{tpu_custom_call.1} parent=1 // pred_region
      _
    $region21: #{tpu_custom_call.1} parent=1 // pred_fallthru
      _
    // Predicated region
    $region22: #{tpu_custom_call.1} parent=1 // pred_check
      _
    $region23: #{tpu_custom_call.1} parent=1 // pred_check_branch
      %43 = sbr.rel (0) target = $region25
    $region24: #{tpu_custom_call.1} parent=1 // pred_region
      %44 = dma.done [#allocation4], 128
    $region25: #{tpu_custom_call.1} parent=1 // pred_fallthru
      _
    // Predicated region
    $region26: #{tpu_custom_call.1} parent=1 // pred_check
      _
    $region27: #{tpu_custom_call.1} parent=1 // pred_check_branch
      %46 = sbr.rel (0) target = $region29
    $region28: #{tpu_custom_call.1} parent=1 // pred_region
      %47 = dma.done [#allocation7], 512
    $region29: #{tpu_custom_call.1} parent=1 // pred_fallthru
      _
    %v48 = vld [vmem:[#allocation3] sm:$0xff]
    %v49 = vld [vmem:[#allocation6] sm:$0xff]
    %v50 = vld [vmem:[#allocation6 + $0x8] sm:$0xff]
    %v51 = vld [vmem:[#allocation6 + $0x10] sm:$0xff]
    %v52 = vld [vmem:[#allocation6 + $0x18] sm:$0xff]
    %v53 = vld [vmem:[%s2] sm:$0x1]
    %v55 = vlaneseq
    %v56 = vshrl.u32 %v55, 7
    %v57 = vsub.s32 0, %v56
    %v58 = vrot.slane %v53, %v57
    %vm60 = vcmask 261120
    %v62 = vsel %vm60, %v48, 0
    %64 = vmatprep.subr.mxu0 0.0
    %65 = vmatpush1.msra.mxu0 0.0
    %66 = vmatprep.subr.mxu0 0.0
    %67 = vmatpush1.msra.mxu0 0.0
    %68 = vmatprep.subr.mxu0 0.0
    %69 = vmatpush1.msra.mxu0 0.0
    %70 = vmatprep.subr.mxu0 0.0
    %71 = vmatpush1.msra.mxu0 0.0
    %72 = vmatprep.subr.mxu0 0.0
    %73 = vmatpush1.msra.mxu0 0.0
    %74 = vmatprep.subr.mxu0 0.0
    %75 = vmatpush1.msra.mxu0 0.0
    %76 = vmatprep.subr.mxu0 0.0
    %77 = vmatpush1.msra.mxu0 0.0
    %78 = vmatprep.subr.mxu0 0.0
    %79 = vmatpush1.msra.mxu0 0.0
    %80 = vmatprep.subr.mxu0 0.0
    %81 = vmatpush1.msra.mxu0 0.0
    %82 = vmatprep.subr.mxu0 0.0
    %83 = vmatpush1.msra.mxu0 0.0
    %84 = vmatprep.subr.mxu0 0.0
    %85 = vmatpush1.msra.mxu0 0.0
    %86 = vmatprep.subr.mxu0 0.0
    %87 = vmatpush1.msra.mxu0 0.0
    %88 = vmatprep.subr.mxu0 0.0
    %89 = vmatpush1.msra.mxu0 %v52
    %90 = vmatprep.subr.mxu0 0.0
    %91 = vmatpush1.msra.mxu0 %v51
    %92 = vmatprep.subr.mxu0 0.0
    %93 = vmatpush1.msra.mxu0 %v50
    %94 = vmatprep.subr.mxu0 0.0
    %95 = vmatpush1.msra.mxu0 %v49
    %96 = vmatprep.subr.mxu0 0.0
    %97 = vmatpush2.msra.mxu0 0.0
    %98 = vmatprep.subr.mxu0 0.0
    %99 = vmatpush2.msra.mxu0 0.0
    %100 = vmatprep.subr.mxu0 0.0
    %101 = vmatpush2.msra.mxu0 0.0
    %102 = vmatprep.subr.mxu0 0.0
    %103 = vmatpush2.msra.mxu0 0.0
    %104 = vmatprep.subr.mxu0 0.0
    %105 = vmatpush2.msra.mxu0 0.0
    %106 = vmatprep.subr.mxu0 0.0
    %107 = vmatpush2.msra.mxu0 0.0
    %108 = vmatprep.subr.mxu0 0.0
    %109 = vmatpush2.msra.mxu0 0.0
    %110 = vmatprep.subr.mxu0 0.0
    %111 = vmatpush2.msra.mxu0 0.0
    %112 = vmatprep.subr.mxu0 0.0
    %113 = vmatpush2.msra.mxu0 0.0
    %114 = vmatprep.subr.mxu0 0.0
    %115 = vmatpush2.msra.mxu0 0.0
    %116 = vmatprep.subr.mxu0 0.0
    %117 = vmatpush2.msra.mxu0 0.0
    %118 = vmatprep.subr.mxu0 0.0
    %119 = vmatpush2.msra.mxu0 0.0
    %120 = vmatprep.subr.mxu0 0.0
    %121 = vmatpush2.msra.mxu0 0.0
    %122 = vmatprep.subr.mxu0 0.0
    %123 = vmatpush2.msra.mxu0 0.0
    %124 = vmatprep.subr.mxu0 0.0
    %125 = vmatpush2.msra.mxu0 0.0
    %126 = vmatprep.subr.mxu0 0.0
    %127 = vmatpush2.msra.mxu0 0.0
    %128 = vmatprep.mubr.f32.mxu0 0.0
    %129 = vmatmul.mubr.f32.gmra.mxu0 %v62
    %v130 = vpop.f32.mrf.mxu0
    %v131 = vadd.f32 %v58, %v130
    %v132 = vpop.f32.mrf.mxu0
    %133 = vdwg.mxu0
    %v134 = vmax.f32 %v131, 0.0
    %v135 = vld [vmem:[%s3] sm:$0x1]
    %s136 = sld [smem:[#allocation2]]
    %v137 = vstv %s136
    %v139 = vsel %vm60, %v135, 0
    %v142 = vsel %vm60, %v134, 0
    %144 = vmatprep.subr.mxu0 0.0
    %145 = vmatpush1.xpose.msra.mxu0 0.0
    %146 = vmatprep.subr.mxu0 0.0
    %147 = vmatpush1.xpose.msra.mxu0 0.0
    %148 = vmatprep.subr.mxu0 0.0
    %149 = vmatpush1.xpose.msra.mxu0 0.0
    %150 = vmatprep.subr.mxu0 0.0
    %151 = vmatpush1.xpose.msra.mxu0 0.0
    %152 = vmatprep.subr.mxu0 0.0
    %153 = vmatpush1.xpose.msra.mxu0 0.0
    %154 = vmatprep.subr.mxu0 0.0
    %155 = vmatpush1.xpose.msra.mxu0 0.0
    %156 = vmatprep.subr.mxu0 0.0
    %157 = vmatpush1.xpose.msra.mxu0 0.0
    %158 = vmatprep.subr.mxu0 0.0
    %159 = vmatpush1.xpose.msra.mxu0 0.0
    %160 = vmatprep.subr.mxu0 0.0
    %161 = vmatpush1.xpose.msra.mxu0 0.0
    %162 = vmatprep.subr.mxu0 0.0
    %163 = vmatpush1.xpose.msra.mxu0 0.0
    %164 = vmatprep.subr.mxu0 0.0
    %165 = vmatpush1.xpose.msra.mxu0 0.0
    %166 = vmatprep.subr.mxu0 0.0
    %167 = vmatpush1.xpose.msra.mxu0 0.0
    %168 = vmatprep.subr.mxu0 0.0
    %169 = vmatpush1.xpose.msra.mxu0 0.0
    %170 = vmatprep.subr.mxu0 0.0
    %171 = vmatpush1.xpose.msra.mxu0 0.0
    %172 = vmatprep.subr.mxu0 0.0
    %173 = vmatpush1.xpose.msra.mxu0 0.0
    %174 = vmatprep.subr.mxu0 0.0
    %175 = vmatpush1.xpose.msra.mxu0 %v142
    %176 = vmatprep.subr.mxu0 0.0
    %177 = vmatpush2.xpose.msra.mxu0 0.0
    %178 = vmatprep.subr.mxu0 0.0
    %179 = vmatpush2.xpose.msra.mxu0 0.0
    %180 = vmatprep.subr.mxu0 0.0
    %181 = vmatpush2.xpose.msra.mxu0 0.0
    %182 = vmatprep.subr.mxu0 0.0
    %183 = vmatpush2.xpose.msra.mxu0 0.0
    %184 = vmatprep.subr.mxu0 0.0
    %185 = vmatpush2.xpose.msra.mxu0 0.0
    %186 = vmatprep.subr.mxu0 0.0
    %187 = vmatpush2.xpose.msra.mxu0 0.0
    %188 = vmatprep.subr.mxu0 0.0
    %189 = vmatpush2.xpose.msra.mxu0 0.0
    %190 = vmatprep.subr.mxu0 0.0
    %191 = vmatpush2.xpose.msra.mxu0 0.0
    %192 = vmatprep.subr.mxu0 0.0
    %193 = vmatpush2.xpose.msra.mxu0 0.0
    %194 = vmatprep.subr.mxu0 0.0
    %195 = vmatpush2.xpose.msra.mxu0 0.0
    %196 = vmatprep.subr.mxu0 0.0
    %197 = vmatpush2.xpose.msra.mxu0 0.0
    %198 = vmatprep.subr.mxu0 0.0
    %199 = vmatpush2.xpose.msra.mxu0 0.0
    %200 = vmatprep.subr.mxu0 0.0
    %201 = vmatpush2.xpose.msra.mxu0 0.0
    %202 = vmatprep.subr.mxu0 0.0
    %203 = vmatpush2.xpose.msra.mxu0 0.0
    %204 = vmatprep.subr.mxu0 0.0
    %205 = vmatpush2.xpose.msra.mxu0 0.0
    %206 = vmatprep.subr.mxu0 0.0
    %207 = vmatpush2.xpose.msra.mxu0 0.0
    %208 = vmatprep.mubr.f32.mxu0 0.0
    %209 = vmatmul.mubr.f32.gmra.mxu0 %v139
    %v210 = vpop.f32.mrf.mxu0
    %v211 = vadd.f32 %v137, %v210
    %v212 = vpop.f32.mrf.mxu0
    %213 = vdwg.mxu0
    %v214 = vxor.u32 %v211, 2147483648
    %v215 = vmul.f32 %v214, 1.442695
    %v216 = vpow.pop %v215
    %v217 = vadd.f32 %v216, 1.0
    %v218 = vrcp.pop %v217
    %v219 = vmul.f32 1.0, %v218
    %v220 = vlaneseq
    %v221 = vshrl.u32 %v220, 7
    %v222 = vsub.s32 0, %v221
    %v223 = vrot.slane %v219, %v222
    %vm224 = vcmask 64512
    %225 = vst.msk [vmem:[#allocation8] sm:$0xff] %vm224, %v223
    // Predicated region
    $region30: #{tpu_custom_call.1} parent=1 // pred_check
      _
    $region31: #{tpu_custom_call.1} parent=1 // pred_check_branch
      %227 = sbr.rel (0) target = $region33
    $region32: #{tpu_custom_call.1} parent=1 // pred_region
      %s229 = ssub.s32 128, 128
      %230 = vsyncadd [#allocation5], %s229
      %s232 = sshll.u32 [#allocation8], 4
      %s233 = int_to_ptr.vmem [resolvable:$true] %s232
      %235 = dma.vmem_to_hbm [thread:$0]  %s233, 128, %s5, [#allocation5]
    $region33: #{tpu_custom_call.1} parent=1 // pred_fallthru
      _
    // Predicated region
    $region34: #{tpu_custom_call.1} parent=1 // pred_check
      _
    $region35: #{tpu_custom_call.1} parent=1 // pred_check_branch
      %237 = sbr.rel (0) target = $region37
    $region36: #{tpu_custom_call.1} parent=1 // pred_region
      %238 = dma.done [#allocation5], 128
    $region37: #{tpu_custom_call.1} parent=1 // pred_fallthru
      _
    %239 = vsyncpa [#allocation4], 1
    %240 = vsyncpa [#allocation7], 1
    %241 = vsyncpa [#allocation5], 1

</llo_original>
